<compile_context>
chip_gen: v5e
topology: v5e:2x2
jax: 0.10.0
libtpu: 0.0.40
codegen_flags: <defaults>
</compile_context>

<pallas_src>
import jax
import jax.numpy as jnp
from jax.experimental import pallas as pl
from jax.experimental.pallas import tpu as pltpu


def _round_up(x, m):
    return ((x + m - 1) // m) * m


def _timestep_embedding_kernel(t_ref, w_ref, b_ref, o_ref):
    # t_ref: (TB, k)   timesteps tile (k batch rows packed per output row)
    # w_ref: (k, Dp)   k == 1: W^T (lane-padded); k > 1: block-diagonal packed W^T
    # b_ref: (1, Dp)   bias (tiled k times along lanes when k > 1)
    # o_ref: (TB, Dp)  lane-dense output tile (Dp % 128 == 0)
    t = t_ref[...].astype(jnp.float32)          # free VPU cast (matches .float())
    w = w_ref[...]
    k = t_ref.shape[1]                          # static, <= 8
    # in_features == 1  ->  k broadcasted multiply-adds on the VPU (no MXU).
    acc = t[:, 0:1] * w[0:1, :]
    for g in range(1, k):
        acc = acc + t[:, g:g + 1] * w[g:g + 1, :]
    o_ref[...] = (acc + b_ref[...]).astype(o_ref.dtype)


def make_timestep_embedding(weight, bias, *, out_dtype=jnp.float32):
    """Build a jitted y = t.float() @ W.T + b (nn.Linear(1, dim)) TPU kernel.

    weight: (dim, 1), bias: (dim,). Returned fn maps (..., 1) or (...,) -> (..., dim).
    All parameter packing happens once here (not per call).
    """
    dim = int(weight.shape[0])
    w_row = weight.reshape(1, dim).astype(jnp.float32)        # W^T as one lane row
    b_row = bias.reshape(1, dim).astype(jnp.float32)

    if dim % 128 == 0:
        k, dim_p, padded = 1, dim, False
        w_param, b_param = w_row, b_row
    elif 128 % dim == 0 and 128 // dim <= 8:
        # Pack k batch rows per lane-dense output row: zero padded HBM bytes,
        # no wrapper slice.  Row g of w_param holds W^T in lanes [g*dim,(g+1)*dim).
        k, dim_p, padded = 128 // dim, 128, False
        w_param = jnp.kron(jnp.eye(k, dtype=jnp.float32), w_row)   # (k, 128) block-diag
        b_param = jnp.tile(b_row, (1, k))                           # (1, 128)
    else:
        # General fallback: pad the lane dim, slice the result in the wrapper.
        k, dim_p, padded = 1, _round_up(dim, 128), True
        pad = dim_p - dim
        w_param = jnp.pad(w_row, ((0, 0), (0, pad)))
        b_param = jnp.pad(b_row, ((0, 0), (0, pad)))

    out_bytes = jnp.dtype(out_dtype).itemsize
    try:
        vmem_cap = int(pltpu.get_tpu_info().vmem_capacity_bytes)
    except Exception:
        vmem_cap = 64 * 1024 * 1024          # assume v7x (worst case) if query fails

    def apply(timesteps):
        lead = timesteps.shape[:-1] if (timesteps.ndim and timesteps.shape[-1] == 1) \
            else timesteps.shape
        t_flat = timesteps.reshape(-1)
        B = t_flat.shape[0]
        B_pad = _round_up(B, k)
        if B_pad != B:                       # rare; zero rows produce bias, sliced off
            t_flat = jnp.pad(t_flat, (0, B_pad - B))
        R = B_pad // k                       # output rows as seen by the kernel
        t2 = t_flat.reshape(R, k)

        # --- tile sizing: the VMEM budget sets the tile, no arbitrary cap -------
        # Per output row, double buffered: one output row + one timesteps row,
        # which lane-pads to 128 lanes of 32-bit regardless of k.
        per_row = 2 * (dim_p * out_bytes + 128 * 4)
        param_bytes = 2 * (k + 1) * dim_p * 4
        budget = vmem_cap // 2               # leave half of physical VMEM untouched
        tb = max(8, ((budget - param_bytes) // per_row) // 8 * 8)
        if R >= 16:
            # Guarantee >= 2 grid steps so the "parallel" axis can use both
            # TensorCores on v7x (no-op on single-TC v5e/v6e).
            tb = min(tb, _round_up(pl.cdiv(R, 2), 8))
        if tb > R:
            tb = R                           # single full block, no masked stores
        grid = (pl.cdiv(R, tb),)

        need = 2 * tb * (dim_p * out_bytes + 128 * 4) + param_bytes
        vmem_limit = min(int(need * 1.25) + (2 << 20), (vmem_cap * 3) // 4)
        vmem_limit = max(vmem_limit, 4 << 20)

        cost = pl.CostEstimate(
            flops=2 * R * k * dim_p,
            transcendentals=0,
            bytes_accessed=R * k * 4 + (k + 1) * dim_p * 4 + R * dim_p * out_bytes,
        )

        out = pl.pallas_call(
            _timestep_embedding_kernel,
            out_shape=jax.ShapeDtypeStruct((R, dim_p), out_dtype),
            grid=grid,
            in_specs=[
                pl.BlockSpec((tb, k), lambda i: (i, 0)),        # timesteps tile
                pl.BlockSpec((k, dim_p), lambda i: (0, 0)),     # W^T, grid-invariant
                pl.BlockSpec((1, dim_p), lambda i: (0, 0)),     # bias, grid-invariant
            ],
            out_specs=pl.BlockSpec((tb, dim_p), lambda i: (i, 0)),
            compiler_params=pltpu.CompilerParams(
                dimension_semantics=("parallel",),
                vmem_limit_bytes=int(vmem_limit),
            ),
            cost_estimate=cost,
        )(t2, w_param, b_param)

        if k > 1:
            out = out.reshape(B_pad, dim)    # row-major bitcast, no data movement
            if B_pad != B:
                out = out[:B]
        elif padded:
            # TODO(synk): let the consumer take the (R, dim_p) slab directly to
            # avoid this extra read+write when dim is not a multiple of 128.
            out = out[:, :dim]
        return out.reshape(lead + (dim,))

    return jax.jit(apply)


def timestep_embedding(timesteps, weight, bias, *, out_dtype=jnp.float32):
    """Convenience one-shot wrapper (prefer make_timestep_embedding for reuse)."""
    return make_timestep_embedding(weight, bias, out_dtype=out_dtype)(timesteps)


if __name__ == "__main__":
    key = jax.random.PRNGKey(0)
    k_t, k_w, k_b = jax.random.split(key, 3)

    batch = 8
    dim = 32

    # Parameters matching nn.Linear(1, dim) shapes.
    weight = jax.random.uniform(k_w, (dim, 1), jnp.float32, minval=-1.0, maxval=1.0)
    bias = jax.random.uniform(k_b, (dim,), jnp.float32, minval=-1.0, maxval=1.0)

    # Timesteps, shape (B, 1) so the Linear's in_features=1 contract matches.
    timesteps = jax.random.uniform(k_t, (batch, 1), jnp.float32, minval=0.0, maxval=1000.0)

    embed = make_timestep_embedding(weight, bias)      # params packed once
    out = jax.block_until_ready(embed(timesteps))

    # Reference check in plain JAX.
    ref = timesteps.astype(jnp.float32) @ weight.T + bias
    assert out.shape == (batch, dim)
    assert jnp.allclose(out, ref, atol=1e-5, rtol=1e-5)

    print("KERNEL_OK")
</pallas_src>

<mosaic_0001>
module attributes {stable_mosaic.version = 11 : i64} {
  func.func @_timestep_embedding_kernel(%arg0: i32, %arg1: memref<2x4xf32, #tpu.memory_space<vmem>>, %arg2: memref<4x128xf32, #tpu.memory_space<vmem>>, %arg3: memref<1x128xf32, #tpu.memory_space<vmem>>, %arg4: memref<2x128xf32, #tpu.memory_space<vmem>>) attributes {dimension_semantics = [#tpu.dimension_semantics<parallel>], iteration_bounds = array<i64: 1>, scalar_prefetch = 0 : i64, scratch_operands = 0 : i64, tpu.core_type = #tpu.core_type<tc>, window_params = [{transform_indices = @transform_0, window_bounds = array<i64: 2, 4>}, {pipeline_mode = #tpu.pipeline_mode<synchronous>, transform_indices = @transform_1, window_bounds = array<i64: 4, 128>}, {pipeline_mode = #tpu.pipeline_mode<synchronous>, transform_indices = @transform_2, window_bounds = array<i64: 1, 128>}, {transform_indices = @transform_3, window_bounds = array<i64: 2, 128>}]} {
    %c0 = arith.constant 0 : index
    %c0_0 = arith.constant 0 : index
    %0 = vector.load %arg1[%c0, %c0_0] : memref<2x4xf32, #tpu.memory_space<vmem>>, vector<2x4xf32>
    %c0_1 = arith.constant 0 : index
    %c0_2 = arith.constant 0 : index
    %1 = vector.load %arg2[%c0_1, %c0_2] : memref<4x128xf32, #tpu.memory_space<vmem>>, vector<4x128xf32>
    %2 = vector.extract_strided_slice %0 {offsets = [0, 0], sizes = [2, 1], strides = [1, 1]} : vector<2x4xf32> to vector<2x1xf32>
    %3 = vector.extract_strided_slice %1 {offsets = [0, 0], sizes = [1, 128], strides = [1, 1]} : vector<4x128xf32> to vector<1x128xf32>
    %4 = vector.broadcast %2 : vector<2x1xf32> to vector<2x128xf32>
    %5 = vector.broadcast %3 : vector<1x128xf32> to vector<2x128xf32>
    %6 = arith.mulf %4, %5 : vector<2x128xf32>
    %7 = vector.extract_strided_slice %0 {offsets = [0, 1], sizes = [2, 1], strides = [1, 1]} : vector<2x4xf32> to vector<2x1xf32>
    %8 = vector.extract_strided_slice %1 {offsets = [1, 0], sizes = [1, 128], strides = [1, 1]} : vector<4x128xf32> to vector<1x128xf32>
    %9 = vector.broadcast %7 : vector<2x1xf32> to vector<2x128xf32>
    %10 = vector.broadcast %8 : vector<1x128xf32> to vector<2x128xf32>
    %11 = arith.mulf %9, %10 : vector<2x128xf32>
    %12 = arith.addf %6, %11 : vector<2x128xf32>
    %13 = vector.extract_strided_slice %0 {offsets = [0, 2], sizes = [2, 1], strides = [1, 1]} : vector<2x4xf32> to vector<2x1xf32>
    %14 = vector.extract_strided_slice %1 {offsets = [2, 0], sizes = [1, 128], strides = [1, 1]} : vector<4x128xf32> to vector<1x128xf32>
    %15 = vector.broadcast %13 : vector<2x1xf32> to vector<2x128xf32>
    %16 = vector.broadcast %14 : vector<1x128xf32> to vector<2x128xf32>
    %17 = arith.mulf %15, %16 : vector<2x128xf32>
    %18 = arith.addf %12, %17 : vector<2x128xf32>
    %19 = vector.extract_strided_slice %0 {offsets = [0, 3], sizes = [2, 1], strides = [1, 1]} : vector<2x4xf32> to vector<2x1xf32>
    %20 = vector.extract_strided_slice %1 {offsets = [3, 0], sizes = [1, 128], strides = [1, 1]} : vector<4x128xf32> to vector<1x128xf32>
    %21 = vector.broadcast %19 : vector<2x1xf32> to vector<2x128xf32>
    %22 = vector.broadcast %20 : vector<1x128xf32> to vector<2x128xf32>
    %23 = arith.mulf %21, %22 : vector<2x128xf32>
    %24 = arith.addf %18, %23 : vector<2x128xf32>
    %c0_3 = arith.constant 0 : index
    %c0_4 = arith.constant 0 : index
    %25 = vector.load %arg3[%c0_3, %c0_4] : memref<1x128xf32, #tpu.memory_space<vmem>>, vector<1x128xf32>
    %26 = vector.broadcast %25 : vector<1x128xf32> to vector<2x128xf32>
    %27 = arith.addf %24, %26 : vector<2x128xf32>
    %c0_5 = arith.constant 0 : index
    %c0_6 = arith.constant 0 : index
    %28 = vector.load %arg4[%c0_5, %c0_6] : memref<2x128xf32, #tpu.memory_space<vmem>>, vector<2x128xf32>
    tpu.vector_store %arg4[%c0_5, %c0_6], %27 {strides = array<i32>} : memref<2x128xf32, #tpu.memory_space<vmem>>, vector<2x128xf32>,
    return
  }
  func.func @transform_0(%arg0: i32) -> (i32, i32) {
    %c0_i32 = arith.constant 0 : i32
    %c0_i32_0 = arith.constant 0 : i32
    return %arg0, %c0_i32 : i32, i32
  }
  func.func @transform_1(%arg0: i32) -> (i32, i32) {
    %c0_i32 = arith.constant 0 : i32
    %c0_i32_0 = arith.constant 0 : i32
    %c0_i32_1 = arith.constant 0 : i32
    return %c0_i32, %c0_i32_0 : i32, i32
  }
  func.func @transform_2(%arg0: i32) -> (i32, i32) {
    %c0_i32 = arith.constant 0 : i32
    %c0_i32_0 = arith.constant 0 : i32
    %c0_i32_1 = arith.constant 0 : i32
    return %c0_i32, %c0_i32_0 : i32, i32
  }
  func.func @transform_3(%arg0: i32) -> (i32, i32) {
    %c0_i32 = arith.constant 0 : i32
    %c0_i32_0 = arith.constant 0 : i32
    return %arg0, %c0_i32 : i32, i32
  }
}

</mosaic_0001>

<llo_original>
// kernel: apply.1
$region0: #{apply.1}
  #allocation0 [shape = 'u32[]', space=smem, size = 0x4, offset = 0x4, fixed_abs, tag = 'smem constant byte address 0x4 - core index']
  #allocation1 [shape = 'u32[72,128]{1,0:T(1,128)}', space=vmem, size = 0x9000, scoped, tag = 'internal scratch']
  %s0 = inlined_call_operand.vmem [shape: f32[2,4], index: 0, kind: input, shape index: {}]
  %s1 = inlined_call_operand.vmem [shape: f32[4,128], index: 1, kind: input, shape index: {}]
  %s2 = inlined_call_operand.vmem [shape: f32[1,128], index: 2, kind: input, shape index: {}]
  %s3 = inlined_call_operand.vmem [shape: f32[2,128], index: 3, kind: output, shape index: {}]
  %s4 = sld [smem:[#allocation0]]
  $region22: #{apply.1} parent=0
    _
  %s6 = ssub.s32 1, %s4
  %s7 = scalar_select 0, %s6, %s4
  // Predicated region
  $region2: #{apply.1} parent=0 // pred_check
    _
  $region3: #{apply.1} parent=0 // pred_check_branch
    %9 = sbr.rel (0) target = $region5
  $region4: #{apply.1} parent=0 // pred_region
    _
  $region5: #{apply.1} parent=0 // pred_fallthru
    _
  // Predicated region
  $region6: #{apply.1} parent=0 // pred_check
    _
  $region7: #{apply.1} parent=0 // pred_check_branch
    %11 = sbr.rel (0) target = $region9
  $region8: #{apply.1} parent=0 // pred_region
    _
  $region9: #{apply.1} parent=0 // pred_fallthru
    _
  // Predicated region
  $region10: #{apply.1} parent=0 // pred_check
    _
  $region11: #{apply.1} parent=0 // pred_check_branch
    %13 = sbr.rel (0) target = $region13
  $region12: #{apply.1} parent=0 // pred_region
    _
  $region13: #{apply.1} parent=0 // pred_fallthru
    _
  %v14 = vld [vmem:[%s0] sm:$0x3]
  %v15 = vld [vmem:[%s1] sm:$0xf]
  %17 = vset.pattern.permute.xlu0 0
  %18 = vperm.xlu0 %17, %v14
  %v19 = vpop.permute.xlu0 %18
  %v21 = vperm.slane %v15, 0
  %v22 = vmul.f32 %v19, %v21
  %23 = vset.pattern.permute.xlu0 1
  %24 = vperm.xlu0 %23, %v14
  %v25 = vpop.permute.xlu0 %24
  %v27 = vperm.slane %v15, 1
  %v28 = vmul.f32 %v25, %v27
  %v29 = vadd.f32 %v22, %v28
  %30 = vset.pattern.permute.xlu0 2
  %31 = vperm.xlu0 %30, %v14
  %v32 = vpop.permute.xlu0 %31
  %v34 = vperm.slane %v15, 2
  %v35 = vmul.f32 %v32, %v34
  %v36 = vadd.f32 %v29, %v35
  %37 = vset.pattern.permute.xlu0 3
  %38 = vperm.xlu0 %37, %v14
  %v39 = vpop.permute.xlu0 %38
  %v41 = vperm.slane %v15, 3
  %v42 = vmul.f32 %v39, %v41
  %v43 = vadd.f32 %v36, %v42
  %v44 = vld [vmem:[%s2] sm:$0x1]
  %v46 = vperm.slane %v44, 0
  %v48 = vadd.f32 %v43, %v46
  %49 = vst [vmem:[%s3] sm:$0x3] %v48
  // Predicated region
  $region14: #{apply.1} parent=0 // pred_check
    _
  $region15: #{apply.1} parent=0 // pred_check_branch
    %51 = sbr.rel (0) target = $region17
  $region16: #{apply.1} parent=0 // pred_region
    _
  $region17: #{apply.1} parent=0 // pred_fallthru
    _
  // Predicated region
  $region18: #{apply.1} parent=0 // pred_check
    _
  $region19: #{apply.1} parent=0 // pred_check_branch
    %53 = sbr.rel (0) target = $region21
  $region20: #{apply.1} parent=0 // pred_region
    _
  $region21: #{apply.1} parent=0 // pred_fallthru
    _

</llo_original>
